<compile_context>
chip_gen: v6e
topology: v6e:2x2x1
jax: 0.10.0
libtpu: 0.0.40
codegen_flags: <defaults>
</compile_context>

<pallas_src>
import functools

import jax
import jax.numpy as jnp
from jax.experimental import pallas as pl
from jax.experimental.pallas import tpu as pltpu

_MIB = 1024 * 1024


def _round_up(x, m):
    return ((x + m - 1) // m) * m


def _chip_vmem_bytes():
    """Physical VMEM of the current chip (64 MiB conservative fallback = v7x)."""
    try:
        info = pltpu.get_tpu_info()
        v = getattr(info, "vmem_capacity_bytes", None)
        if v:
            return int(v)
    except Exception:
        pass
    return 64 * _MIB


def _vmem_budget(required_bytes, phys=None):
    """Explicit VMEM budget: double-buffered blocks + f32 temporaries + margin,
    clamped below the chip's physical VMEM (leaves 8 MiB for Mosaic scratch)."""
    if phys is None:
        phys = _chip_vmem_bytes()
    ceiling = phys - 8 * _MIB
    return int(max(16 * _MIB, min(required_bytes + 4 * _MIB, ceiling)))


# ----------------------------------------------------------------------------
# Kernel 1: row-wise L2 normalisation
#   out = x * rsqrt(sum(x*x, axis=-1))   (rsqrt -> EUP slot, multiply -> VPU)
# Matches the PyTorch `h / h.norm(dim=-1, keepdim=True)` exactly (no epsilon:
# an all-zero row is NaN in both implementations).
# ----------------------------------------------------------------------------
def _l2_normalize_kernel(x_ref, o_ref):
    x = x_ref[...].astype(jnp.float32)
    inv = jax.lax.rsqrt(jnp.sum(x * x, axis=-1, keepdims=True))
    o_ref[...] = (x * inv).astype(o_ref.dtype)


def l2_normalize(x, *, max_tile_rows=None):
    """L2-normalise a (..., D) tensor along the last axis.

    Memory-bound: row tile sized for ~4 MiB per pipeline buffer, pl.cdiv grid
    (boundary blocks masked by Pallas, no wrapper pad/copy), 'parallel' axis
    so the sweep is megacore-shardable on v7x.
    """
    d = x.shape[-1]
    x2 = x.reshape(-1, d)
    rows = x2.shape[0]
    itemsize = jnp.dtype(x.dtype).itemsize

    target_buf_bytes = 4 * _MIB
    cap = max(8, (target_buf_bytes // (d * itemsize)) // 8 * 8)
    cap = min(cap, 4096)
    if max_tile_rows is not None:
        cap = min(cap, max(8, _round_up(max_tile_rows, 8)))
    tile = min(cap, _round_up(rows, 8))
    grid = pl.cdiv(rows, tile)

    block_bytes = 2 * tile * d * itemsize          # in + out pipeline blocks
    temp_bytes = 3 * tile * d * 4                  # in-kernel f32 temporaries
    vmem_limit = _vmem_budget(2 * block_bytes + temp_bytes)

    # TODO(synk): if DMA is still exposed at these tile sizes on v7x, add
    # pipeline_mode=pl.Buffered(3) to the input spec instead of shrinking tiles.
    out = pl.pallas_call(
        _l2_normalize_kernel,
        out_shape=jax.ShapeDtypeStruct((rows, d), x.dtype),
        grid=(grid,),
        in_specs=[pl.BlockSpec((tile, d), lambda i: (i, 0))],
        out_specs=pl.BlockSpec((tile, d), lambda i: (i, 0)),
        compiler_params=pltpu.CompilerParams(
            dimension_semantics=("parallel",),
            vmem_limit_bytes=vmem_limit),
    )(x2)
    return out.reshape(x.shape)


# ----------------------------------------------------------------------------
# Kernel 2: intervention (representation swap, non-DAS path)
#   edited[b,p,d] = (W^T[b,p,:S] @ src[b,:,d]) + base[b,p,d] * W^T[b,p,S]
# ----------------------------------------------------------------------------
def _intervention_kernel(w_ref, src_ref, base_ref, o_ref, *, s_pad):
    w = w_ref[0]                                   # (tp, s_pad+1) P-major weights
    # s_pad is a multiple of 128 -> lane-group-aligned slices, unmasked MXU feed.
    acc = jax.lax.dot_general(
        w[:, :s_pad], src_ref[0],
        (((1,), (0,)), ((), ())),
        preferred_element_type=jnp.float32)        # (tp, td) f32
    w_base = w[:, s_pad:s_pad + 1].astype(jnp.float32)   # (tp, 1)
    out = acc + base_ref[0].astype(jnp.float32) * w_base
    o_ref[0] = out.astype(o_ref.dtype)


def intervention_swap(intervention_weight, source_hidden_states, base_hidden_states,
                      *, p_tile_cap=256, d_tile_cap=None):
    """
    intervention_weight : (B, S+1, P)
    source_hidden_states: (B, S, D)  source states at the intervention layer
    base_hidden_states  : (B, P, D)  base states at the hook point
    returns edited base hidden states (B, P, D)
    """
    b, s_plus_1, p = intervention_weight.shape
    s = s_plus_1 - 1
    d = source_hidden_states.shape[-1]
    out_dtype = base_hidden_states.dtype
    compute_dtype = source_hidden_states.dtype
    es = jnp.dtype(compute_dtype).itemsize
    eb = jnp.dtype(base_hidden_states.dtype).itemsize
    eo = jnp.dtype(out_dtype).itemsize

    # ---- pad the contraction dim S to a 128-lane multiple (zero padding is
    # exact for the contraction).  This is the ONLY wrapper-side pad; P and D
    # boundaries are handled by Pallas block masking.
    s_pad = max(128, _round_up(s, 128))
    src = source_hidden_states
    if s_pad != s:
        src = jnp.pad(src, ((0, 0), (0, s_pad - s), (0, 0)))

    # One P-major (B, P, s_pad+1) weight array in the compute dtype: transpose-
    # free kernel matmul, and W is cast ONCE here (it is re-fetched once per
    # d-tile, so narrow dtype halves that redundant traffic).
    w_sw = jnp.swapaxes(intervention_weight, 1, 2)        # (B, P, S+1)
    w_src = w_sw[..., :s]
    w_base = w_sw[..., s:]
    if s_pad != s:
        w_src = jnp.pad(w_src, ((0, 0), (0, 0), (0, s_pad - s)))
    w_t = jnp.concatenate([w_src, w_base], axis=-1).astype(compute_dtype)

    # ---- tile sizing against the actual chip VMEM
    vmem = _chip_vmem_bytes()
    big_vmem = vmem >= 100 * _MIB                  # v5e / v6e (128 MiB)
    if d_tile_cap is None:
        d_tile_cap = 2048 if big_vmem else 1024
    src_buf_target = (16 if big_vmem else 8) * _MIB

    sub_align = max(8, 32 // es)                   # dtype-native sublane packing
    tp = min(_round_up(p_tile_cap, sub_align), _round_up(p, sub_align))
    td_by_src = max(128, (src_buf_target // (s_pad * es)) // 128 * 128)
    td = max(128, min(d_tile_cap, td_by_src, _round_up(d, 128)) // 128 * 128)

    np_ = pl.cdiv(p, tp)
    nd = pl.cdiv(d, td)

    # ---- grid: P-tiles innermost so the (s_pad, td) source block stays
    # resident across the inner loop; the LARGER of (batch, d-tiles) leads so
    # v7x megacore always has a >=2-iteration parallel axis to shard.
    if b >= nd:
        grid = (b, nd, np_)
        w_map = lambda bi, di, pi: (bi, pi, 0)
        src_map = lambda bi, di, pi: (bi, 0, di)
        bd_map = lambda bi, di, pi: (bi, pi, di)
    else:
        grid = (nd, b, np_)
        w_map = lambda di, bi, pi: (bi, pi, 0)
        src_map = lambda di, bi, pi: (bi, 0, di)
        bd_map = lambda di, bi, pi: (bi, pi, di)

    block_bytes = (tp * (s_pad + 1) * es          # W tile
                   + s_pad * td * es              # src tile
                   + tp * td * eb                 # base tile
                   + tp * td * eo)                # out tile
    temp_bytes = 3 * tp * td * 4                  # f32 acc / upcasts
    vmem_limit = _vmem_budget(2 * block_bytes + temp_bytes, vmem)

    out = pl.pallas_call(
        functools.partial(_intervention_kernel, s_pad=s_pad),
        out_shape=jax.ShapeDtypeStruct((b, p, d), out_dtype),
        grid=grid,
        in_specs=[
            pl.BlockSpec((1, tp, s_pad + 1), w_map),
            pl.BlockSpec((1, s_pad, td), src_map),
            pl.BlockSpec((1, tp, td), bd_map),
        ],
        out_specs=pl.BlockSpec((1, tp, td), bd_map),
        compiler_params=pltpu.CompilerParams(
            dimension_semantics=("parallel", "parallel", "parallel"),
            vmem_limit_bytes=vmem_limit),
    )(w_t, src, base_hidden_states)
    return out


# ----------------------------------------------------------------------------
# Forward wrapper mirroring LlamaAblatedInterpreter.forward (non-DAS path,
# inference_mode=None, intervention_weight supplied).
# ----------------------------------------------------------------------------
def llama_ablated_interpreter_forward(
        params,
        base_attention_mask,          # (B, P) int32
        source_attention_mask,        # (B, S) int32
        base_hidden_states,           # (B, P, L, D) stacked per-layer states
        source_hidden_states,         # (B, S, L, D) stacked per-layer states
        source_layer_hidden,          # (B, S, D) source states @ intervention layer
        base_hook_hidden,             # (B, P, D) base states at the hook point
        intervention_weight,          # (B, S+1, P)
        vector_ids,                   # (B,) int32
):
    # ---- glue: position ids (cumsum * mask), matches torch.cumsum(...)*mask
    base_position_ids = jnp.cumsum(base_attention_mask, axis=1) * base_attention_mask
    source_position_ids = jnp.cumsum(source_attention_mask, axis=1) * source_attention_mask

    # ---- Pallas: normalise the stacked hidden-state tensors
    base_hidden_norm = l2_normalize(base_hidden_states)
    source_hidden_norm = l2_normalize(source_hidden_states)

    # ---- glue: hypernetwork embedding lookup (nn.Embedding)
    hypernet_hidden_states = jnp.take(params["hypernetwork_embedding"],
                                      vector_ids, axis=0)[:, None, :]   # (B, 1, D)

    # TODO(synk): InterpreterUnembedCrossAttention is not defined in the
    # reference source; intervention_weight is taken as an input instead of
    # being produced by the unembedding head.
    # TODO(synk): frozen AutoModelForCausalLM target-model forward (produces
    # per-layer hidden states / logits) has no self-contained Pallas
    # equivalent; the hidden states are taken as inputs here.
    # TODO(synk): 'global_argmax' / 'column_argmax' / 'bidding_argmax'
    # inference modes and the DAS subspace modules are not implemented.

    # ---- Pallas: intervention matrix + representation swap (non-DAS path)
    edited_hook_hidden = intervention_swap(
        intervention_weight, source_layer_hidden, base_hook_hidden)

    return {
        "edited_hidden_states": edited_hook_hidden,
        "intervention_weight": intervention_weight,
        "vanilla_base_hidden_states": base_hidden_norm,
        "vanilla_source_hidden_states": source_hidden_norm,
        "hypernet_hidden_states": hypernet_hidden_states,
        "base_position_ids": base_position_ids,
        "source_position_ids": source_position_ids,
    }


# ----------------------------------------------------------------------------
# Pure-JAX reference for the kernelised pieces (correctness check).
# ----------------------------------------------------------------------------
def _reference(intervention_weight, src_layer, base_hook, base_stack, src_stack):
    w_src = intervention_weight[:, :-1, :]
    w_base = intervention_weight[:, -1, :]
    interv = jnp.einsum("bsp,bsd->bpd", w_src, src_layer)
    edited = base_hook * w_base[..., None] + interv
    bn = base_stack / jnp.linalg.norm(base_stack, axis=-1, keepdims=True)
    sn = src_stack / jnp.linalg.norm(src_stack, axis=-1, keepdims=True)
    return edited, bn, sn


if __name__ == "__main__":
    import numpy as np

    key = jax.random.PRNGKey(0)
    dtype = jnp.float32

    # ------------------------------------------------------------------ #
    # Config 1: small "clean" shapes through the full forward wrapper.
    # ------------------------------------------------------------------ #
    B, P, S, L, D = 2, 8, 8, 3, 128
    NUM_CONCEPT = 16
    ks = jax.random.split(key, 8)

    params = {
        "hypernetwork_embedding": jax.random.normal(ks[0], (NUM_CONCEPT, D), dtype) * 0.02,
    }
    base_attention_mask = jnp.ones((B, P), jnp.int32)
    source_attention_mask = jnp.ones((B, S), jnp.int32)
    base_hidden_states = jax.random.normal(ks[1], (B, P, L, D), dtype)
    source_hidden_states = jax.random.normal(ks[2], (B, S, L, D), dtype)
    source_layer_hidden = jax.random.normal(ks[3], (B, S, D), dtype)
    base_hook_hidden = jax.random.normal(ks[4], (B, P, D), dtype)
    logits = jax.random.normal(ks[5], (B, S + 1, P), dtype)
    intervention_weight = jax.nn.softmax(logits, axis=1)
    vector_ids = jax.random.randint(ks[6], (B,), 0, NUM_CONCEPT)

    out = llama_ablated_interpreter_forward(
        params,
        base_attention_mask, source_attention_mask,
        base_hidden_states, source_hidden_states,
        source_layer_hidden, base_hook_hidden,
        intervention_weight, vector_ids)
    jax.block_until_ready(out)

    ref_edited, ref_bn, ref_sn = _reference(
        intervention_weight, source_layer_hidden, base_hook_hidden,
        base_hidden_states, source_hidden_states)

    np.testing.assert_allclose(np.asarray(out["edited_hidden_states"]),
                               np.asarray(ref_edited), rtol=1e-5, atol=1e-5)
    np.testing.assert_allclose(np.asarray(out["vanilla_base_hidden_states"]),
                               np.asarray(ref_bn), rtol=1e-5, atol=1e-5)
    np.testing.assert_allclose(np.asarray(out["vanilla_source_hidden_states"]),
                               np.asarray(ref_sn), rtol=1e-5, atol=1e-5)

    # ------------------------------------------------------------------ #
    # Config 2: irregular shapes + small tile caps to exercise multi-tile
    # grids, masked P/D boundary blocks, and the cdiv L2-norm grid.
    # ------------------------------------------------------------------ #
    B2, P2, S2, L2, D2 = 2, 10, 7, 3, 200
    kk = jax.random.split(jax.random.PRNGKey(1), 5)
    src_layer2 = jax.random.normal(kk[0], (B2, S2, D2), dtype)
    base_hook2 = jax.random.normal(kk[1], (B2, P2, D2), dtype)
    w2 = jax.nn.softmax(jax.random.normal(kk[2], (B2, S2 + 1, P2), dtype), axis=1)
    base_stack2 = jax.random.normal(kk[3], (B2, P2, L2, D2), dtype)
    src_stack2 = jax.random.normal(kk[4], (B2, S2, L2, D2), dtype)

    edited2 = intervention_swap(w2, src_layer2, base_hook2,
                                p_tile_cap=8, d_tile_cap=128)
    bn2 = l2_normalize(base_stack2, max_tile_rows=16)
    sn2 = l2_normalize(src_stack2, max_tile_rows=16)
    jax.block_until_ready((edited2, bn2, sn2))

    ref_edited2, ref_bn2, ref_sn2 = _reference(
        w2, src_layer2, base_hook2, base_stack2, src_stack2)
    np.testing.assert_allclose(np.asarray(edited2), np.asarray(ref_edited2),
                               rtol=1e-5, atol=1e-5)
    np.testing.assert_allclose(np.asarray(bn2), np.asarray(ref_bn2),
                               rtol=1e-5, atol=1e-5)
    np.testing.assert_allclose(np.asarray(sn2), np.asarray(ref_sn2),
                               rtol=1e-5, atol=1e-5)

    print("KERNEL_OK")
</pallas_src>

<mosaic_0001>
module attributes {stable_mosaic.version = 11 : i64} {
  func.func @_l2_normalize_kernel(%arg0: i32, %arg1: memref<48x128xf32, #tpu.memory_space<vmem>>, %arg2: memref<48x128xf32, #tpu.memory_space<vmem>>) attributes {dimension_semantics = [#tpu.dimension_semantics<parallel>], iteration_bounds = array<i64: 1>, scalar_prefetch = 0 : i64, scratch_operands = 0 : i64, tpu.core_type = #tpu.core_type<tc>, window_params = [{transform_indices = @transform_0, window_bounds = array<i64: 48, 128>}, {transform_indices = @transform_1, window_bounds = array<i64: 48, 128>}]} {
    %c0 = arith.constant 0 : index
    %c0_0 = arith.constant 0 : index
    %0 = vector.load %arg1[%c0, %c0_0] : memref<48x128xf32, #tpu.memory_space<vmem>>, vector<48x128xf32>
    %1 = arith.mulf %0, %0 : vector<48x128xf32>
    %cst = arith.constant dense<0.000000e+00> : vector<48xf32>
    %2 = vector.multi_reduction <add>, %1, %cst [1] : vector<48x128xf32> to vector<48xf32>
    %3 = vector.shape_cast %2 : vector<48xf32> to vector<48x1xf32>
    %4 = math.rsqrt %3 : vector<48x1xf32>
    %5 = vector.broadcast %4 : vector<48x1xf32> to vector<48x128xf32>
    %6 = arith.mulf %0, %5 : vector<48x128xf32>
    %c0_1 = arith.constant 0 : index
    %c0_2 = arith.constant 0 : index
    %7 = vector.load %arg2[%c0_1, %c0_2] : memref<48x128xf32, #tpu.memory_space<vmem>>, vector<48x128xf32>
    tpu.vector_store %arg2[%c0_1, %c0_2], %6 {strides = array<i32>} : memref<48x128xf32, #tpu.memory_space<vmem>>, vector<48x128xf32>,
    return
  }
  func.func @transform_0(%arg0: i32) -> (i32, i32) {
    %c0_i32 = arith.constant 0 : i32
    %c0_i32_0 = arith.constant 0 : i32
    return %arg0, %c0_i32 : i32, i32
  }
  func.func @transform_1(%arg0: i32) -> (i32, i32) {
    %c0_i32 = arith.constant 0 : i32
    %c0_i32_0 = arith.constant 0 : i32
    return %arg0, %c0_i32 : i32, i32
  }
}

</mosaic_0001>

<llo_original>
// kernel: tpu_custom_call.1
$region0: #{tpu_custom_call.1}
  #allocation0 [shape = 'u32[]', space=smem, size = 0x4, offset = 0x4, fixed_abs, tag = 'smem constant byte address 0x4 - core index']
  #allocation1 [shape = 'u32[144,128]{1,0:T(1,128)}', space=vmem, size = 0x12000, scoped, tag = 'internal scratch']
  %s0 = inlined_call_operand.hbm [shape: f32[48,128], index: 0, kind: input, shape index: {}]
  %s1 = inlined_call_operand.hbm [shape: f32[48,128], index: 1, kind: output, shape index: {}]
  %s2 = sld [smem:[#allocation0]]
  $region18: #{tpu_custom_call.1} parent=0
    _
  %s4 = ssub.s32 1, %s2
  %s5 = scalar_select 0, %s4, %s2
  $region1: #{tpu_custom_call.1} parent=0
    #allocation2 [shape = 'u8[24576]{0}', space=vmem, size = 0x6000, scoped, tag = 'input window, operand 0, single buffered']
    #allocation3 [shape = 's32[1]{0}', space=sflag, size = 0x4, scoped, tag = 'scoped memory for tpu_custom_call.1']
    #allocation4 [shape = 's32[1]{0}', space=sflag, size = 0x4, scoped, tag = 'scoped memory for tpu_custom_call.1']
    #allocation5 [shape = 'u8[24576]{0}', space=vmem, size = 0x6000, scoped, tag = 'output window, operand 0, single buffered']
    %6 = vsyncpa [#allocation3], 0
    %7 = vsyncpa [#allocation4], 0
    // Predicated region
    $region2: #{tpu_custom_call.1} parent=1 // pred_check
      _
    $region3: #{tpu_custom_call.1} parent=1 // pred_check_branch
      %9 = sbr.rel (0) target = $region5
    $region4: #{tpu_custom_call.1} parent=1 // pred_region
      %s11 = ssub.s32 768, 768
      %12 = vsyncadd [#allocation3], %s11
      %s13 = sshll.u32 [#allocation2], 4
      %s14 = int_to_ptr.vmem [resolvable:$true] %s13
      %19 = dma.hbm_to_vmem [thread:$0]  %s0, 768, %s14, [#allocation3], 128, 128, 8
    $region5: #{tpu_custom_call.1} parent=1 // pred_fallthru
      _
    // Predicated region
    $region6: #{tpu_custom_call.1} parent=1 // pred_check
      _
    $region7: #{tpu_custom_call.1} parent=1 // pred_check_branch
      %21 = sbr.rel (0) target = $region9
    $region8: #{tpu_custom_call.1} parent=1 // pred_region
      %22 = dma.done [#allocation3], 768
    $region9: #{tpu_custom_call.1} parent=1 // pred_fallthru
      _
    %v23 = vld [vmem:[#allocation2] sm:$0xff]
    %v24 = vld [vmem:[#allocation2 + $0x8] sm:$0xff]
    %v25 = vld [vmem:[#allocation2 + $0x10] sm:$0xff]
    %v26 = vld [vmem:[#allocation2 + $0x18] sm:$0xff]
    %v27 = vld [vmem:[#allocation2 + $0x20] sm:$0xff]
    %v28 = vld [vmem:[#allocation2 + $0x28] sm:$0xff]
    %v29 = vmul.f32 %v23, %v23
    %v30 = vmul.f32 %v24, %v24
    %v31 = vmul.f32 %v25, %v25
    %v32 = vmul.f32 %v26, %v26
    %v33 = vmul.f32 %v27, %v27
    %v34 = vmul.f32 %v28, %v28
    %35 = vadd.xlane.f32.xlu0 %v29
    %v36 = vpop.xlane.xlu0 %35
    %37 = vadd.xlane.f32.xlu0 %v30
    %v38 = vpop.xlane.xlu0 %37
    %39 = vadd.xlane.f32.xlu0 %v31
    %v40 = vpop.xlane.xlu0 %39
    %41 = vadd.xlane.f32.xlu0 %v32
    %v42 = vpop.xlane.xlu0 %41
    %43 = vadd.xlane.f32.xlu0 %v33
    %v44 = vpop.xlane.xlu0 %43
    %45 = vadd.xlane.f32.xlu0 %v34
    %v46 = vpop.xlane.xlu0 %45
    %v47 = vrsqrt.pop %v36
    %v48 = vrsqrt.pop %v38
    %v49 = vrsqrt.pop %v40
    %v50 = vrsqrt.pop %v42
    %v51 = vrsqrt.pop %v44
    %v52 = vrsqrt.pop %v46
    %v53 = vmul.f32 %v23, %v47
    %v54 = vmul.f32 %v24, %v48
    %v55 = vmul.f32 %v25, %v49
    %v56 = vmul.f32 %v26, %v50
    %v57 = vmul.f32 %v27, %v51
    %v58 = vmul.f32 %v28, %v52
    %59 = vst [vmem:[#allocation5] sm:$0xff] %v53
    %60 = vst [vmem:[#allocation5 + $0x8] sm:$0xff] %v54
    %61 = vst [vmem:[#allocation5 + $0x10] sm:$0xff] %v55
    %62 = vst [vmem:[#allocation5 + $0x18] sm:$0xff] %v56
    %63 = vst [vmem:[#allocation5 + $0x20] sm:$0xff] %v57
    %64 = vst [vmem:[#allocation5 + $0x28] sm:$0xff] %v58
    // Predicated region
    $region10: #{tpu_custom_call.1} parent=1 // pred_check
      _
    $region11: #{tpu_custom_call.1} parent=1 // pred_check_branch
      %66 = sbr.rel (0) target = $region13
    $region12: #{tpu_custom_call.1} parent=1 // pred_region
      %s68 = ssub.s32 768, 768
      %69 = vsyncadd [#allocation4], %s68
      %s70 = sshll.u32 [#allocation5], 4
      %s71 = int_to_ptr.vmem [resolvable:$true] %s70
      %76 = dma.vmem_to_hbm [thread:$0]  %s71, 768, %s1, [#allocation4], 128, 128, 8
    $region13: #{tpu_custom_call.1} parent=1 // pred_fallthru
      _
    // Predicated region
    $region14: #{tpu_custom_call.1} parent=1 // pred_check
      _
    $region15: #{tpu_custom_call.1} parent=1 // pred_check_branch
      %78 = sbr.rel (0) target = $region17
    $region16: #{tpu_custom_call.1} parent=1 // pred_region
      %79 = dma.done [#allocation4], 768
    $region17: #{tpu_custom_call.1} parent=1 // pred_fallthru
      _
    %80 = vsyncpa [#allocation3], 1
    %81 = vsyncpa [#allocation4], 1

</llo_original>
